<compile_context>
chip_gen: v7x
topology: tpu7x:2x2x1
jax: 0.10.0
libtpu: 0.0.40
codegen_flags: <defaults>
</compile_context>

<pallas_src>
import math
from functools import partial

import jax
import jax.numpy as jnp
from jax import lax
from jax.experimental import pallas as pl
from jax.experimental.pallas import tpu as pltpu


# ----------------------------- in-kernel helpers ----------------------------

def _attend_heads(q_bf, k_bf, v_bf, attn_ref, *, num_heads, head_dim):
    """Per-head attention, deferred softmax normalization, paired lane-dense stores."""

    def one_head(hh):
        lo = hh * head_dim
        hi = lo + head_dim
        qh = q_bf[:, lo:hi]                                 # [TQ, D] bf16 (pre-scaled)
        kh = k_bf[:, lo:hi]                                 # [S,  D] bf16
        vh = v_bf[:, lo:hi]                                 # [S,  D] bf16
        # q·kᵀ with the transpose folded into the contraction (no XLU transpose).
        s = lax.dot_general(qh, kh, (((1,), (1,)), ((), ())),
                            preferred_element_type=jnp.float32)        # [TQ, S] f32
        m = jnp.max(s, axis=-1, keepdims=True)
        p = jnp.exp(s - m)                                   # unnormalized probs
        denom = jnp.sum(p, axis=-1, keepdims=True)           # [TQ, 1]
        ctx = jnp.dot(p.astype(jnp.bfloat16), vh,
                      preferred_element_type=jnp.float32)    # [TQ, D] f32
        # Deferred normalization: TQ*D multiplies instead of TQ*S.
        ctx = ctx * pl.reciprocal(denom, approx=True)
        return ctx.astype(jnp.bfloat16)

    # TODO(synk): for H >= 16, a single batched dot_general over [H, TQ, D] x
    # [H, S, D] would avoid per-head MXU drain bubbles entirely.
    for hp in range(num_heads // 2):
        h0 = 2 * hp
        lo = h0 * head_dim
        slab = jnp.concatenate([one_head(h0), one_head(h0 + 1)], axis=-1)
        attn_ref[:, lo:lo + 2 * head_dim] = slab             # lane-dense bf16 store
    if num_heads % 2:
        hh = num_heads - 1
        lo = hh * head_dim
        attn_ref[:, lo:lo + head_dim] = one_head(hh)


# ------------------------------- Pallas kernel -------------------------------

def _mha_kernel(h_ref, wqkv_ref, bqkv_ref, wo_ref, bo_ref, o_ref, *scratch,
                num_heads, head_dim, q_block, seq_len):
    E = num_heads * head_dim

    if q_block == seq_len:
        (attn_ref,) = scratch
        # Fully fused QKV projection: one MXU call with N = 3E.
        h = h_ref[0]                                                     # [S, E] bf16
        qkv = (jnp.dot(h, wqkv_ref[...], preferred_element_type=jnp.float32)
               + bqkv_ref[0])                                            # [S, 3E] f32
        qkv_bf = qkv.astype(jnp.bfloat16)
        q_bf = qkv_bf[:, :E]                                             # pre-scaled
        k_bf = qkv_bf[:, E:2 * E]
        v_bf = qkv_bf[:, 2 * E:]
    else:
        kv_ref, attn_ref = scratch
        qt = pl.program_id(1)

        # K/V projected ONCE per batch element (qt axis is "arbitrary", so the
        # persistent scratch carries across query tiles of the same batch row).
        @pl.when(qt == 0)
        def _():
            h = h_ref[0]                                                 # [S, E] bf16
            kv = (jnp.dot(h, wqkv_ref[:, E:], preferred_element_type=jnp.float32)
                  + bqkv_ref[0, E:])                                     # [S, 2E] f32
            kv_ref[...] = kv.astype(jnp.bfloat16)

        start = pl.multiple_of(qt * q_block, q_block)
        hq = h_ref[0, pl.ds(start, q_block), :]                          # [TQ, E] bf16
        q = (jnp.dot(hq, wqkv_ref[:, :E], preferred_element_type=jnp.float32)
             + bqkv_ref[0, :E])                                          # [TQ, E] f32
        q_bf = q.astype(jnp.bfloat16)                                    # pre-scaled
        k_bf = kv_ref[:, :E]
        v_bf = kv_ref[:, E:]

    _attend_heads(q_bf, k_bf, v_bf, attn_ref,
                  num_heads=num_heads, head_dim=head_dim)

    # Fused output projection over the full E contraction width.
    out = (jnp.dot(attn_ref[...], wo_ref[...], preferred_element_type=jnp.float32)
           + bo_ref[0])                                                  # [TQ, E] f32
    o_ref[0] = out.astype(o_ref.dtype)


# ------------------------------ weight packing --------------------------------

def pack_marian_attention_params(params, *, num_heads):
    """One-time packing (do this at parameter-load time, not per call).

    PyTorch Linear stores [out, in]; transpose to [in, out], fuse QKV, cast to
    bf16, and fold 1/sqrt(head_dim) into Wq and bq.
    """
    E = params["q_proj_w"].shape[0]
    head_dim = E // num_heads
    scale = 1.0 / math.sqrt(head_dim)
    wdt = jnp.bfloat16
    wqkv = jnp.concatenate(
        [params["q_proj_w"].T * scale, params["k_proj_w"].T, params["v_proj_w"].T],
        axis=1).astype(wdt)                                          # [E, 3E]
    bqkv = jnp.concatenate(
        [params["q_proj_b"] * scale, params["k_proj_b"], params["v_proj_b"]]
    ).reshape(1, 3 * E).astype(jnp.float32)                          # [1, 3E]
    wo = params["out_proj_w"].T.astype(wdt)                          # [E, E]
    bo = params["out_proj_b"].reshape(1, E).astype(jnp.float32)      # [1, E]
    return {"wqkv": wqkv, "bqkv": bqkv, "wo": wo, "bo": bo}


# --------------------------------- wrapper ------------------------------------

def _vmem_limit_bytes():
    cap = 128 * 1024 * 1024
    try:
        cap = pltpu.get_tpu_info().vmem_capacity_bytes
    except Exception:
        pass
    if cap <= 64 * 1024 * 1024:          # v7x-class: leave headroom
        return 48 * 1024 * 1024
    return 64 * 1024 * 1024              # v5e / v6e (128 MiB physical)


def _pick_q_block(seq_len):
    # Bound per-tile f32 intermediates ([TQ, 3E] qkv, [TQ, S] scores) for long
    # sequences; fully fused for short ones.
    if seq_len > 512:
        for cand in range(256, 7, -8):
            if seq_len % cand == 0:
                return cand
    return seq_len
    # TODO(synk): for batch == 1 on v7x, q-tiling with the qt axis marked
    # "parallel" (re-projecting K/V per tile) would use both TensorCores.


def marian_attention_bettertransformer(hidden_states, packed_params, *, num_heads,
                                       q_block=None):
    """hidden_states: [B, S, E]. packed_params: output of pack_marian_attention_params."""
    B, S, E = hidden_states.shape
    head_dim = E // num_heads
    assert head_dim * num_heads == E
    if q_block is None:
        q_block = _pick_q_block(S)
    assert S % q_block == 0 and (q_block == S or q_block % 8 == 0)
    num_q_blocks = S // q_block

    wqkv = packed_params["wqkv"]
    bqkv = packed_params["bqkv"]
    wo = packed_params["wo"]
    bo = packed_params["bo"]

    # bf16 activations into the kernel: halves the hidden DMA; matmul numerics
    # are unchanged (the kernel fed bf16 to the MXU anyway).
    hidden_bf16 = hidden_states.astype(jnp.bfloat16)

    kernel = partial(_mha_kernel, num_heads=num_heads, head_dim=head_dim,
                     q_block=q_block, seq_len=S)

    scratch_shapes = []
    if q_block != S:
        scratch_shapes.append(pltpu.VMEM((S, 2 * E), jnp.bfloat16))   # persistent K/V
    scratch_shapes.append(pltpu.VMEM((q_block, E), jnp.bfloat16))     # attn context

    # qt must stay sequential (K/V scratch carry) when tiled; batch stays parallel.
    dim_sem = ("parallel", "arbitrary") if num_q_blocks > 1 else ("parallel", "parallel")

    # TODO(synk): pipeline_mode=pl.Buffered(1) on the constant weight inputs would
    # avoid double-buffering Wqkv/Wo (extra VMEM headroom on v7x).
    attn_output = pl.pallas_call(
        kernel,
        out_shape=jax.ShapeDtypeStruct((B, S, E), hidden_states.dtype),
        grid_spec=pltpu.PrefetchScalarGridSpec(
            num_scalar_prefetch=0,
            grid=(B, num_q_blocks),
            in_specs=[
                pl.BlockSpec((1, S, E), lambda b, qt: (b, 0, 0)),     # hidden (full seq)
                pl.BlockSpec((E, 3 * E), lambda b, qt: (0, 0)),       # fused Wqkv (scaled)
                pl.BlockSpec((1, 3 * E), lambda b, qt: (0, 0)),       # fused bqkv (scaled)
                pl.BlockSpec((E, E), lambda b, qt: (0, 0)),           # Wo
                pl.BlockSpec((1, E), lambda b, qt: (0, 0)),           # bo
            ],
            out_specs=pl.BlockSpec((1, q_block, E), lambda b, qt: (b, qt, 0)),
            scratch_shapes=scratch_shapes,
        ),
        compiler_params=pltpu.CompilerParams(
            dimension_semantics=dim_sem,
            vmem_limit_bytes=_vmem_limit_bytes(),
        ),
    )(hidden_bf16, wqkv, bqkv, wo, bo)

    # Module returns (attn_output, attn_weights=None, past_key_value)
    return attn_output, None, None


# ----------------------------- reference (JAX) -------------------------------

def _reference(hidden_states, params, *, num_heads):
    B, S, E = hidden_states.shape
    D = E // num_heads
    lin = lambda x, w, b: x @ w.T + b
    q = lin(hidden_states, params["q_proj_w"], params["q_proj_b"])
    k = lin(hidden_states, params["k_proj_w"], params["k_proj_b"])
    v = lin(hidden_states, params["v_proj_w"], params["v_proj_b"])
    shp = lambda x: x.reshape(B, S, num_heads, D).transpose(0, 2, 1, 3)
    qh, kh, vh = shp(q), shp(k), shp(v)
    s = jnp.einsum("bhqd,bhkd->bhqk", qh, kh) / math.sqrt(D)
    p = jax.nn.softmax(s, axis=-1)
    a = jnp.einsum("bhqk,bhkd->bhqd", p, vh)
    a = a.transpose(0, 2, 1, 3).reshape(B, S, E)
    return lin(a, params["out_proj_w"], params["out_proj_b"])


# --------------------------------- main --------------------------------------

if __name__ == "__main__":
    B, S, E, H = 2, 16, 32, 4   # batch, seq, embed_dim, num_heads

    key = jax.random.PRNGKey(0)
    keys = jax.random.split(key, 9)
    scale = 0.05
    params = {
        "q_proj_w":   scale * jax.random.normal(keys[0], (E, E), jnp.float32),
        "q_proj_b":   scale * jax.random.normal(keys[1], (E,),   jnp.float32),
        "k_proj_w":   scale * jax.random.normal(keys[2], (E, E), jnp.float32),
        "k_proj_b":   scale * jax.random.normal(keys[3], (E,),   jnp.float32),
        "v_proj_w":   scale * jax.random.normal(keys[4], (E, E), jnp.float32),
        "v_proj_b":   scale * jax.random.normal(keys[5], (E,),   jnp.float32),
        "out_proj_w": scale * jax.random.normal(keys[6], (E, E), jnp.float32),
        "out_proj_b": scale * jax.random.normal(keys[7], (E,),   jnp.float32),
    }
    hidden_states = jax.random.normal(keys[8], (B, S, E), jnp.float32)

    packed = pack_marian_attention_params(params, num_heads=H)
    ref = _reference(hidden_states, params, num_heads=H)

    # Fully fused path (q_block == S).
    out, _, _ = marian_attention_bettertransformer(hidden_states, packed, num_heads=H)
    out = jax.block_until_ready(out)
    assert out.shape == (B, S, E)
    # bf16 matmuls (f32 accumulation) + approx reciprocal => loose tolerance.
    assert jnp.allclose(out, ref, atol=1e-2, rtol=1e-2), "mismatch (fused) vs reference"

    # Query-tiled path with persistent K/V scratch (q_block < S).
    out_t, _, _ = marian_attention_bettertransformer(hidden_states, packed,
                                                     num_heads=H, q_block=8)
    out_t = jax.block_until_ready(out_t)
    assert jnp.allclose(out_t, ref, atol=1e-2, rtol=1e-2), "mismatch (tiled) vs reference"

    # TODO(synk): cross-attention / past_key_value caching and attention_mask
    # paths of bart_forward are not exercised (BetterTransformer eval self-attn only).
    print("KERNEL_OK")
</pallas_src>

<mosaic_0001>
module attributes {stable_mosaic.version = 11 : i64} {
  func.func @_mha_kernel(%arg0: i32, %arg1: i32, %arg2: memref<1x16x32xbf16, #tpu.memory_space<vmem>>, %arg3: memref<32x96xbf16, #tpu.memory_space<vmem>>, %arg4: memref<1x96xf32, #tpu.memory_space<vmem>>, %arg5: memref<32x32xbf16, #tpu.memory_space<vmem>>, %arg6: memref<1x32xf32, #tpu.memory_space<vmem>>, %arg7: memref<1x16x32xf32, #tpu.memory_space<vmem>>, %arg8: memref<16x32xbf16, #tpu.memory_space<vmem>>) attributes {dimension_semantics = [#tpu.dimension_semantics<parallel>, #tpu.dimension_semantics<parallel>], iteration_bounds = array<i64: 2, 1>, scalar_prefetch = 0 : i64, scratch_operands = 1 : i64, tpu.core_type = #tpu.core_type<tc>, window_params = [{transform_indices = @transform_0, window_bounds = array<i64: 1, 16, 32>}, {pipeline_mode = #tpu.pipeline_mode<synchronous>, transform_indices = @transform_1, window_bounds = array<i64: 32, 96>}, {pipeline_mode = #tpu.pipeline_mode<synchronous>, transform_indices = @transform_2, window_bounds = array<i64: 1, 96>}, {pipeline_mode = #tpu.pipeline_mode<synchronous>, transform_indices = @transform_3, window_bounds = array<i64: 32, 32>}, {pipeline_mode = #tpu.pipeline_mode<synchronous>, transform_indices = @transform_4, window_bounds = array<i64: 1, 32>}, {transform_indices = @transform_5, window_bounds = array<i64: 1, 16, 32>}]} {
    %c0 = arith.constant 0 : index
    %c0_0 = arith.constant 0 : index
    %c0_1 = arith.constant 0 : index
    %0 = vector.load %arg2[%c0, %c0_0, %c0_1] : memref<1x16x32xbf16, #tpu.memory_space<vmem>>, vector<1x16x32xbf16>
    %1 = vector.shape_cast %0 : vector<1x16x32xbf16> to vector<16x32xbf16>
    %c0_2 = arith.constant 0 : index
    %c0_3 = arith.constant 0 : index
    %2 = vector.load %arg3[%c0_2, %c0_3] : memref<32x96xbf16, #tpu.memory_space<vmem>>, vector<32x96xbf16>
    %cst = arith.constant dense<0.000000e+00> : vector<16x96xf32>
    %3 = tpu.matmul %1, %2, %cst {dimension_numbers = #tpu.dot_dimension_numbers<[1], [0], [0], [1], [0, 0, 1, 1], [], []>} : vector<16x32xbf16>, vector<32x96xbf16>, vector<16x96xf32> -> vector<16x96xf32>
    %c0_4 = arith.constant 0 : index
    %c0_5 = arith.constant 0 : index
    %4 = vector.load %arg4[%c0_4, %c0_5] : memref<1x96xf32, #tpu.memory_space<vmem>>, vector<1x96xf32>
    %5 = vector.shape_cast %4 : vector<1x96xf32> to vector<96xf32>
    %6 = vector.shape_cast %5 : vector<96xf32> to vector<1x96xf32>
    %7 = vector.broadcast %6 : vector<1x96xf32> to vector<16x96xf32>
    %8 = arith.addf %3, %7 : vector<16x96xf32>
    %9 = arith.truncf %8 : vector<16x96xf32> to vector<16x96xbf16>
    %10 = vector.extract_strided_slice %9 {offsets = [0, 0], sizes = [16, 32], strides = [1, 1]} : vector<16x96xbf16> to vector<16x32xbf16>
    %11 = vector.extract_strided_slice %9 {offsets = [0, 32], sizes = [16, 32], strides = [1, 1]} : vector<16x96xbf16> to vector<16x32xbf16>
    %12 = vector.extract_strided_slice %9 {offsets = [0, 64], sizes = [16, 32], strides = [1, 1]} : vector<16x96xbf16> to vector<16x32xbf16>
    %13 = vector.extract_strided_slice %10 {offsets = [0, 0], sizes = [16, 8], strides = [1, 1]} : vector<16x32xbf16> to vector<16x8xbf16>
    %14 = vector.extract_strided_slice %11 {offsets = [0, 0], sizes = [16, 8], strides = [1, 1]} : vector<16x32xbf16> to vector<16x8xbf16>
    %15 = vector.extract_strided_slice %12 {offsets = [0, 0], sizes = [16, 8], strides = [1, 1]} : vector<16x32xbf16> to vector<16x8xbf16>
    %cst_6 = arith.constant dense<0.000000e+00> : vector<16x16xf32>
    %16 = tpu.matmul %13, %14, %cst_6 {dimension_numbers = #tpu.dot_dimension_numbers<[1], [1], [0], [0], [0, 0, 1, 0], [], []>} : vector<16x8xbf16>, vector<16x8xbf16>, vector<16x16xf32> -> vector<16x16xf32>
    %cst_7 = arith.constant dense<0xFF800000> : vector<16xf32>
    %17 = vector.multi_reduction <maximumf>, %16, %cst_7 [1] : vector<16x16xf32> to vector<16xf32>
    %18 = vector.shape_cast %17 : vector<16xf32> to vector<16x1xf32>
    %19 = vector.broadcast %18 : vector<16x1xf32> to vector<16x16xf32>
    %20 = arith.subf %16, %19 : vector<16x16xf32>
    %21 = math.exp %20 : vector<16x16xf32>
    %cst_8 = arith.constant dense<0.000000e+00> : vector<16xf32>
    %22 = vector.multi_reduction <add>, %21, %cst_8 [1] : vector<16x16xf32> to vector<16xf32>
    %23 = vector.shape_cast %22 : vector<16xf32> to vector<16x1xf32>
    %24 = arith.truncf %21 : vector<16x16xf32> to vector<16x16xbf16>
    %cst_9 = arith.constant dense<0.000000e+00> : vector<16x8xf32>
    %25 = tpu.matmul %24, %15, %cst_9 {dimension_numbers = #tpu.dot_dimension_numbers<[1], [0], [0], [1], [0, 0, 1, 1], [], []>} : vector<16x16xbf16>, vector<16x8xbf16>, vector<16x8xf32> -> vector<16x8xf32>
    %26 = tpu.reciprocal %23 {approx = true} : vector<16x1xf32> -> vector<16x1xf32>
    %27 = vector.broadcast %26 : vector<16x1xf32> to vector<16x8xf32>
    %28 = arith.mulf %25, %27 : vector<16x8xf32>
    %29 = arith.truncf %28 : vector<16x8xf32> to vector<16x8xbf16>
    %30 = vector.extract_strided_slice %10 {offsets = [0, 8], sizes = [16, 8], strides = [1, 1]} : vector<16x32xbf16> to vector<16x8xbf16>
    %31 = vector.extract_strided_slice %11 {offsets = [0, 8], sizes = [16, 8], strides = [1, 1]} : vector<16x32xbf16> to vector<16x8xbf16>
    %32 = vector.extract_strided_slice %12 {offsets = [0, 8], sizes = [16, 8], strides = [1, 1]} : vector<16x32xbf16> to vector<16x8xbf16>
    %cst_10 = arith.constant dense<0.000000e+00> : vector<16x16xf32>
    %33 = tpu.matmul %30, %31, %cst_10 {dimension_numbers = #tpu.dot_dimension_numbers<[1], [1], [0], [0], [0, 0, 1, 0], [], []>} : vector<16x8xbf16>, vector<16x8xbf16>, vector<16x16xf32> -> vector<16x16xf32>
    %cst_11 = arith.constant dense<0xFF800000> : vector<16xf32>
    %34 = vector.multi_reduction <maximumf>, %33, %cst_11 [1] : vector<16x16xf32> to vector<16xf32>
    %35 = vector.shape_cast %34 : vector<16xf32> to vector<16x1xf32>
    %36 = vector.broadcast %35 : vector<16x1xf32> to vector<16x16xf32>
    %37 = arith.subf %33, %36 : vector<16x16xf32>
    %38 = math.exp %37 : vector<16x16xf32>
    %cst_12 = arith.constant dense<0.000000e+00> : vector<16xf32>
    %39 = vector.multi_reduction <add>, %38, %cst_12 [1] : vector<16x16xf32> to vector<16xf32>
    %40 = vector.shape_cast %39 : vector<16xf32> to vector<16x1xf32>
    %41 = arith.truncf %38 : vector<16x16xf32> to vector<16x16xbf16>
    %cst_13 = arith.constant dense<0.000000e+00> : vector<16x8xf32>
    %42 = tpu.matmul %41, %32, %cst_13 {dimension_numbers = #tpu.dot_dimension_numbers<[1], [0], [0], [1], [0, 0, 1, 1], [], []>} : vector<16x16xbf16>, vector<16x8xbf16>, vector<16x8xf32> -> vector<16x8xf32>
    %43 = tpu.reciprocal %40 {approx = true} : vector<16x1xf32> -> vector<16x1xf32>
    %44 = vector.broadcast %43 : vector<16x1xf32> to vector<16x8xf32>
    %45 = arith.mulf %42, %44 : vector<16x8xf32>
    %46 = arith.truncf %45 : vector<16x8xf32> to vector<16x8xbf16>
    %47 = tpu.concatenate %29, %46 in 1 : vector<16x8xbf16>, vector<16x8xbf16> -> vector<16x16xbf16>
    %c0_14 = arith.constant 0 : index
    %c0_15 = arith.constant 0 : index
    %48 = vector.load %arg8[%c0_14, %c0_15] : memref<16x32xbf16, #tpu.memory_space<vmem>>, vector<16x16xbf16>
    tpu.vector_store %arg8[%c0_14, %c0_15], %47 {strides = array<i32>} : memref<16x32xbf16, #tpu.memory_space<vmem>>, vector<16x16xbf16>,
    %49 = vector.extract_strided_slice %10 {offsets = [0, 16], sizes = [16, 8], strides = [1, 1]} : vector<16x32xbf16> to vector<16x8xbf16>
    %50 = vector.extract_strided_slice %11 {offsets = [0, 16], sizes = [16, 8], strides = [1, 1]} : vector<16x32xbf16> to vector<16x8xbf16>
    %51 = vector.extract_strided_slice %12 {offsets = [0, 16], sizes = [16, 8], strides = [1, 1]} : vector<16x32xbf16> to vector<16x8xbf16>
    %cst_16 = arith.constant dense<0.000000e+00> : vector<16x16xf32>
    %52 = tpu.matmul %49, %50, %cst_16 {dimension_numbers = #tpu.dot_dimension_numbers<[1], [1], [0], [0], [0, 0, 1, 0], [], []>} : vector<16x8xbf16>, vector<16x8xbf16>, vector<16x16xf32> -> vector<16x16xf32>
    %cst_17 = arith.constant dense<0xFF800000> : vector<16xf32>
    %53 = vector.multi_reduction <maximumf>, %52, %cst_17 [1] : vector<16x16xf32> to vector<16xf32>
    %54 = vector.shape_cast %53 : vector<16xf32> to vector<16x1xf32>
    %55 = vector.broadcast %54 : vector<16x1xf32> to vector<16x16xf32>
    %56 = arith.subf %52, %55 : vector<16x16xf32>
    %57 = math.exp %56 : vector<16x16xf32>
    %cst_18 = arith.constant dense<0.000000e+00> : vector<16xf32>
    %58 = vector.multi_reduction <add>, %57, %cst_18 [1] : vector<16x16xf32> to vector<16xf32>
    %59 = vector.shape_cast %58 : vector<16xf32> to vector<16x1xf32>
    %60 = arith.truncf %57 : vector<16x16xf32> to vector<16x16xbf16>
    %cst_19 = arith.constant dense<0.000000e+00> : vector<16x8xf32>
    %61 = tpu.matmul %60, %51, %cst_19 {dimension_numbers = #tpu.dot_dimension_numbers<[1], [0], [0], [1], [0, 0, 1, 1], [], []>} : vector<16x16xbf16>, vector<16x8xbf16>, vector<16x8xf32> -> vector<16x8xf32>
    %62 = tpu.reciprocal %59 {approx = true} : vector<16x1xf32> -> vector<16x1xf32>
    %63 = vector.broadcast %62 : vector<16x1xf32> to vector<16x8xf32>
    %64 = arith.mulf %61, %63 : vector<16x8xf32>
    %65 = arith.truncf %64 : vector<16x8xf32> to vector<16x8xbf16>
    %66 = vector.extract_strided_slice %10 {offsets = [0, 24], sizes = [16, 8], strides = [1, 1]} : vector<16x32xbf16> to vector<16x8xbf16>
    %67 = vector.extract_strided_slice %11 {offsets = [0, 24], sizes = [16, 8], strides = [1, 1]} : vector<16x32xbf16> to vector<16x8xbf16>
    %68 = vector.extract_strided_slice %12 {offsets = [0, 24], sizes = [16, 8], strides = [1, 1]} : vector<16x32xbf16> to vector<16x8xbf16>
    %cst_20 = arith.constant dense<0.000000e+00> : vector<16x16xf32>
    %69 = tpu.matmul %66, %67, %cst_20 {dimension_numbers = #tpu.dot_dimension_numbers<[1], [1], [0], [0], [0, 0, 1, 0], [], []>} : vector<16x8xbf16>, vector<16x8xbf16>, vector<16x16xf32> -> vector<16x16xf32>
    %cst_21 = arith.constant dense<0xFF800000> : vector<16xf32>
    %70 = vector.multi_reduction <maximumf>, %69, %cst_21 [1] : vector<16x16xf32> to vector<16xf32>
    %71 = vector.shape_cast %70 : vector<16xf32> to vector<16x1xf32>
    %72 = vector.broadcast %71 : vector<16x1xf32> to vector<16x16xf32>
    %73 = arith.subf %69, %72 : vector<16x16xf32>
    %74 = math.exp %73 : vector<16x16xf32>
    %cst_22 = arith.constant dense<0.000000e+00> : vector<16xf32>
    %75 = vector.multi_reduction <add>, %74, %cst_22 [1] : vector<16x16xf32> to vector<16xf32>
    %76 = vector.shape_cast %75 : vector<16xf32> to vector<16x1xf32>
    %77 = arith.truncf %74 : vector<16x16xf32> to vector<16x16xbf16>
    %cst_23 = arith.constant dense<0.000000e+00> : vector<16x8xf32>
    %78 = tpu.matmul %77, %68, %cst_23 {dimension_numbers = #tpu.dot_dimension_numbers<[1], [0], [0], [1], [0, 0, 1, 1], [], []>} : vector<16x16xbf16>, vector<16x8xbf16>, vector<16x8xf32> -> vector<16x8xf32>
    %79 = tpu.reciprocal %76 {approx = true} : vector<16x1xf32> -> vector<16x1xf32>
    %80 = vector.broadcast %79 : vector<16x1xf32> to vector<16x8xf32>
    %81 = arith.mulf %78, %80 : vector<16x8xf32>
    %82 = arith.truncf %81 : vector<16x8xf32> to vector<16x8xbf16>
    %83 = tpu.concatenate %65, %82 in 1 : vector<16x8xbf16>, vector<16x8xbf16> -> vector<16x16xbf16>
    %c0_24 = arith.constant 0 : index
    %c16 = arith.constant 16 : index
    %84 = vector.load %arg8[%c0_24, %c16] : memref<16x32xbf16, #tpu.memory_space<vmem>>, vector<16x16xbf16>
    tpu.vector_store %arg8[%c0_24, %c16], %83 {strides = array<i32>} : memref<16x32xbf16, #tpu.memory_space<vmem>>, vector<16x16xbf16>,
    %c0_25 = arith.constant 0 : index
    %c0_26 = arith.constant 0 : index
    %85 = vector.load %arg8[%c0_25, %c0_26] : memref<16x32xbf16, #tpu.memory_space<vmem>>, vector<16x32xbf16>
    %c0_27 = arith.constant 0 : index
    %c0_28 = arith.constant 0 : index
    %86 = vector.load %arg5[%c0_27, %c0_28] : memref<32x32xbf16, #tpu.memory_space<vmem>>, vector<32x32xbf16>
    %cst_29 = arith.constant dense<0.000000e+00> : vector<16x32xf32>
    %87 = tpu.matmul %85, %86, %cst_29 {dimension_numbers = #tpu.dot_dimension_numbers<[1], [0], [0], [1], [0, 0, 1, 1], [], []>} : vector<16x32xbf16>, vector<32x32xbf16>, vector<16x32xf32> -> vector<16x32xf32>
    %c0_30 = arith.constant 0 : index
    %c0_31 = arith.constant 0 : index
    %88 = vector.load %arg6[%c0_30, %c0_31] : memref<1x32xf32, #tpu.memory_space<vmem>>, vector<1x32xf32>
    %89 = vector.shape_cast %88 : vector<1x32xf32> to vector<32xf32>
    %90 = vector.shape_cast %89 : vector<32xf32> to vector<1x32xf32>
    %91 = vector.broadcast %90 : vector<1x32xf32> to vector<16x32xf32>
    %92 = arith.addf %87, %91 : vector<16x32xf32>
    %c0_32 = arith.constant 0 : index
    %c0_33 = arith.constant 0 : index
    %c0_34 = arith.constant 0 : index
    %93 = vector.load %arg7[%c0_32, %c0_33, %c0_34] : memref<1x16x32xf32, #tpu.memory_space<vmem>>, vector<1x16x32xf32>
    %94 = vector.shape_cast %93 : vector<1x16x32xf32> to vector<16x32xf32>
    %95 = vector.shape_cast %92 : vector<16x32xf32> to vector<1x16x32xf32>
    tpu.vector_store %arg7[%c0_32, %c0_33, %c0_34], %95 {strides = array<i32>} : memref<1x16x32xf32, #tpu.memory_space<vmem>>, vector<1x16x32xf32>,
    return
  }
  func.func @transform_0(%arg0: i32, %arg1: i32) -> (i32, i32, i32) {
    %c0_i32 = arith.constant 0 : i32
    %c0_i32_0 = arith.constant 0 : i32
    %c0_i32_1 = arith.constant 0 : i32
    return %arg0, %c0_i32, %c0_i32_0 : i32, i32, i32
  }
  func.func @transform_1(%arg0: i32, %arg1: i32) -> (i32, i32) {
    %c0_i32 = arith.constant 0 : i32
    %c0_i32_0 = arith.constant 0 : i32
    %c0_i32_1 = arith.constant 0 : i32
    return %c0_i32, %c0_i32_0 : i32, i32
  }
  func.func @transform_2(%arg0: i32, %arg1: i32) -> (i32, i32) {
    %c0_i32 = arith.constant 0 : i32
    %c0_i32_0 = arith.constant 0 : i32
    %c0_i32_1 = arith.constant 0 : i32
    return %c0_i32, %c0_i32_0 : i32, i32
  }
  func.func @transform_3(%arg0: i32, %arg1: i32) -> (i32, i32) {
    %c0_i32 = arith.constant 0 : i32
    %c0_i32_0 = arith.constant 0 : i32
    %c0_i32_1 = arith.constant 0 : i32
    return %c0_i32, %c0_i32_0 : i32, i32
  }
  func.func @transform_4(%arg0: i32, %arg1: i32) -> (i32, i32) {
    %c0_i32 = arith.constant 0 : i32
    %c0_i32_0 = arith.constant 0 : i32
    %c0_i32_1 = arith.constant 0 : i32
    return %c0_i32, %c0_i32_0 : i32, i32
  }
  func.func @transform_5(%arg0: i32, %arg1: i32) -> (i32, i32, i32) {
    %c0_i32 = arith.constant 0 : i32
    %c0_i32_0 = arith.constant 0 : i32
    return %arg0, %arg1, %c0_i32 : i32, i32, i32
  }
}

</mosaic_0001>

<llo_original>
// kernel: tpu_custom_call.1
$region0: #{tpu_custom_call.1}
  #allocation0 [shape = 'u32[]', space=smem, size = 0x4, offset = 0x4, fixed_abs, tag = 'smem constant byte address 0x4 - core index']
  #allocation1 [shape = 'u32[144,128]{1,0:T(1,128)}', space=vmem, size = 0x12000, scoped, tag = 'internal scratch']
  #allocation2 [shape = 'bf16[16,32]{1,0:T(16,128)(2,1)}', space=vmem, size = 0x1000, scoped, tag = 'scratch operand']
  %s0 = inlined_call_operand.hbm [shape: bf16[2,16,32], index: 0, kind: input, shape index: {}]
  %s1 = inlined_call_operand.hbm [shape: bf16[32,96], index: 1, kind: input, shape index: {}]
  %s2 = inlined_call_operand.hbm [shape: f32[1,96], index: 2, kind: input, shape index: {}]
  %s3 = inlined_call_operand.hbm [shape: bf16[32,32], index: 3, kind: input, shape index: {}]
  %s4 = inlined_call_operand.hbm [shape: f32[1,32], index: 4, kind: input, shape index: {}]
  %s5 = inlined_call_operand.hbm [shape: f32[2,16,32], index: 5, kind: output, shape index: {}]
  %s6 = sld [smem:[#allocation0]]
  $region73: #{tpu_custom_call.1} parent=0
    _
  %s8 = ssub.s32 1, %s6
  %s9 = scalar_select 0, %s8, %s6
  $region1: #{tpu_custom_call.1} parent=0
    #allocation3 [shape = 'u8[8192]{0}', space=vmem, size = 0x2000, scoped, tag = 'input window, operand 0']
    #allocation4 [shape = 's32[2]{0}', space=sflag, size = 0x8, scoped, tag = 'scoped memory for tpu_custom_call.1']
    #allocation5 [shape = 's32[2]{0}', space=sflag, size = 0x8, scoped, tag = 'scoped memory for tpu_custom_call.1']
    #allocation6 [shape = 'u8[8192]{0}', space=vmem, size = 0x2000, scoped, tag = 'input window, operand 1, single buffered']
    #allocation7 [shape = 's32[1]{0}', space=sflag, size = 0x4, scoped, tag = 'scoped memory for tpu_custom_call.1']
    #allocation8 [shape = 'u8[512]{0}', space=vmem, size = 0x400, scoped, tag = 'input window, operand 2, single buffered']
    #allocation9 [shape = 'u8[8192]{0}', space=vmem, size = 0x2000, scoped, tag = 'input window, operand 3, single buffered']
    #allocation10 [shape = 's32[1]{0}', space=sflag, size = 0x4, scoped, tag = 'scoped memory for tpu_custom_call.1']
    #allocation11 [shape = 'u8[512]{0}', space=vmem, size = 0x400, scoped, tag = 'input window, operand 4, single buffered']
    #allocation12 [shape = 'u8[16384]{0}', space=vmem, size = 0x4000, scoped, tag = 'output window, operand 0']
    %10 = vsyncpa [#allocation4], 0
    %s11 = scalar_lea.sflag [#allocation4], 1
    %12 = vsyncpa %s11, 0
    %13 = vsyncpa [#allocation7], 0
    %14 = vsyncpa [#allocation10], 0
    %15 = vsyncpa [#allocation5], 0
    %s16 = scalar_lea.sflag [#allocation5], 1
    %17 = vsyncpa %s16, 0
    loop: start=0, step=1, limit=4
    $region2: #{tpu_custom_call.1} parent=1 // loop_pre_header
      _
    $region3: #{tpu_custom_call.1} parent=1 // loop_header
      %s19 = sphi 0, %s23
      %p20 = scmp.ge.s32.totalorder %s19, 4
      %s26 = sphi 0, %s38
      %s27 = sphi 0, %s34
      %s28 = sphi 0, %s26
      %s29 = sphi 0, %s27
      %s30 = sphi 0, %s28
      %s31 = sphi 0, %s29
      %s41 = sphi 0, %s43
      %s44 = sphi 0, %s41
      %s45 = sphi 0, %s44
      %s61 = sphi 0, %s45
      %s65 = sphi 0, %s65
      %s67 = sphi 0, %s65
      %s68 = sphi 0, %s67
      %s82 = sphi 0, %s68
      %s86 = sphi 0, %s86
      %s88 = sphi 0, %s86
      %s89 = sphi 0, %s88
      %s103 = sphi 0, %s89
      %s107 = sphi 0, %s107
      %s109 = sphi 0, %s107
      %s110 = sphi 0, %s109
      %s124 = sphi 0, %s110
      %s128 = sphi 0, %s128
      %s130 = sphi 0, %s128
      %s131 = sphi 0, %s130
      %s145 = sphi 0, %s131
      %s153 = sphi 0, %s155
      %s156 = sphi 0, %s153
      %s157 = sphi 0, %s156
      %s173 = sphi 0, %s157
    $region4: #{tpu_custom_call.1} parent=1 // loop_header_branch
      %22 = sbr.rel (%p20) target = $region8
    $region5: #{tpu_custom_call.1} parent=1 // loop_body
      %s24 = ssub.s32 %s19, 1
      %s25 = ssub.s32 %s19, 2
      %s32 = sadd.s32 1, %s27
      %p33 = scmp.ge.s32.totalorder %s32, 1
      %s34 = scalar_select %p33, 0, %s32
      %s35 = sadd.s32 1, %s26
      %s36 = scalar_select %p33, %s35, %s26
      %p37 = scmp.ge.s32.totalorder %s36, 2
      %s38 = scalar_select %p37, 0, %s36
      %s39 = ssub.s32 %s26, %s38
      %p40 = scmp.eq.s32.totalorder %s39, 0
      %s42 = sadd.s32 %s41, 1
      %s43 = scalar_select %p40, %s41, %s42
      %p46 = pneg %p40
      %p47 = scmp.eq.s32.totalorder %s19, 1
      %p48 = por %p46, %p47
      %p49 = scmp.ne.s32.totalorder %s41, %s44
      %p50 = scmp.eq.s32.totalorder %s19, 0
      %p51 = por %p49, %p50
      %p52 = scmp.ne.s32.totalorder %s41, %s44
      %p53 = scmp.eq.s32.totalorder %s24, 1
      %p54 = por %p52, %p53
      %p55 = scmp.ne.s32.totalorder %s44, %s45
      %p56 = scmp.eq.s32.totalorder %s24, 0
      %p57 = por %p55, %p56
      %p58 = scmp.ne.s32.totalorder %s44, %s45
      %p59 = scmp.eq.s32.totalorder %s25, 1
      %p60 = por %p58, %p59
      %p62 = scmp.ne.s32.totalorder %s45, %s61
      %p63 = scmp.eq.s32.totalorder %s25, 0
      %p64 = por %p62, %p63
      %s66 = sadd.s32 %s65, 1
      %p69 = scmp.eq.s32.totalorder %s19, 1
      %p70 = scmp.ne.s32.totalorder %s65, %s67
      %p71 = scmp.eq.s32.totalorder %s19, 0
      %p72 = por %p70, %p71
      %p73 = scmp.ne.s32.totalorder %s65, %s67
      %p74 = scmp.eq.s32.totalorder %s24, 1
      %p75 = por %p73, %p74
      %p76 = scmp.ne.s32.totalorder %s67, %s68
      %p77 = scmp.eq.s32.totalorder %s24, 0
      %p78 = por %p76, %p77
      %p79 = scmp.ne.s32.totalorder %s67, %s68
      %p80 = scmp.eq.s32.totalorder %s25, 1
      %p81 = por %p79, %p80
      %p83 = scmp.ne.s32.totalorder %s68, %s82
      %p84 = scmp.eq.s32.totalorder %s25, 0
      %p85 = por %p83, %p84
      %s87 = sadd.s32 %s86, 1
      %p90 = scmp.eq.s32.totalorder %s19, 1
      %p91 = scmp.ne.s32.totalorder %s86, %s88
      %p92 = scmp.eq.s32.totalorder %s19, 0
      %p93 = por %p91, %p92
      %p94 = scmp.ne.s32.totalorder %s86, %s88
      %p95 = scmp.eq.s32.totalorder %s24, 1
      %p96 = por %p94, %p95
      %p97 = scmp.ne.s32.totalorder %s88, %s89
      %p98 = scmp.eq.s32.totalorder %s24, 0
      %p99 = por %p97, %p98
      %p100 = scmp.ne.s32.totalorder %s88, %s89
      %p101 = scmp.eq.s32.totalorder %s25, 1
      %p102 = por %p100, %p101
      %p104 = scmp.ne.s32.totalorder %s89, %s103
      %p105 = scmp.eq.s32.totalorder %s25, 0
      %p106 = por %p104, %p105
      %s108 = sadd.s32 %s107, 1
      %p111 = scmp.eq.s32.totalorder %s19, 1
      %p112 = scmp.ne.s32.totalorder %s107, %s109
      %p113 = scmp.eq.s32.totalorder %s19, 0
      %p114 = por %p112, %p113
      %p115 = scmp.ne.s32.totalorder %s107, %s109
      %p116 = scmp.eq.s32.totalorder %s24, 1
      %p117 = por %p115, %p116
      %p118 = scmp.ne.s32.totalorder %s109, %s110
      %p119 = scmp.eq.s32.totalorder %s24, 0
      %p120 = por %p118, %p119
      %p121 = scmp.ne.s32.totalorder %s109, %s110
      %p122 = scmp.eq.s32.totalorder %s25, 1
      %p123 = por %p121, %p122
      %p125 = scmp.ne.s32.totalorder %s110, %s124
      %p126 = scmp.eq.s32.totalorder %s25, 0
      %p127 = por %p125, %p126
      %s129 = sadd.s32 %s128, 1
      %p132 = scmp.eq.s32.totalorder %s19, 1
      %p133 = scmp.ne.s32.totalorder %s128, %s130
      %p134 = scmp.eq.s32.totalorder %s19, 0
      %p135 = por %p133, %p134
      %p136 = scmp.ne.s32.totalorder %s128, %s130
      %p137 = scmp.eq.s32.totalorder %s24, 1
      %p138 = por %p136, %p137
      %p139 = scmp.ne.s32.totalorder %s130, %s131
      %p140 = scmp.eq.s32.totalorder %s24, 0
      %p141 = por %p139, %p140
      %p142 = scmp.ne.s32.totalorder %s130, %s131
      %p143 = scmp.eq.s32.totalorder %s25, 1
      %p144 = por %p142, %p143
      %p146 = scmp.ne.s32.totalorder %s131, %s145
      %p147 = scmp.eq.s32.totalorder %s25, 0
      %p148 = por %p146, %p147
      %s149 = ssub.s32 %s26, %s38
      %s150 = ssub.s32 %s27, %s34
      %s151 = sor.u32 %s149, %s150
      %p152 = scmp.eq.s32.totalorder %s151, 0
      %s154 = sadd.s32 %s153, 1
      %s155 = scalar_select %p152, %s153, %s154
      %p158 = pneg %p152
      %p159 = scmp.eq.s32.totalorder %s19, 1
      %p160 = por %p158, %p159
      %p161 = scmp.ne.s32.totalorder %s153, %s156
      %p162 = scmp.eq.s32.totalorder %s19, 0
      %p163 = por %p161, %p162
      %p164 = scmp.ne.s32.totalorder %s153, %s156
      %p165 = scmp.eq.s32.totalorder %s24, 1
      %p166 = por %p164, %p165
      %p167 = scmp.ne.s32.totalorder %s156, %s157
      %p168 = scmp.eq.s32.totalorder %s24, 0
      %p169 = por %p167, %p168
      %p170 = scmp.ne.s32.totalorder %s156, %s157
      %p171 = scmp.eq.s32.totalorder %s25, 1
      %p172 = por %p170, %p171
      %p174 = scmp.ne.s32.totalorder %s157, %s173
      %p175 = scmp.eq.s32.totalorder %s25, 0
      %p176 = por %p174, %p175
      %p177 = scmp.le.s32.totalorder 1, %s19
      %p178 = scmp.lt.s32.totalorder %s19, 3
      %p179 = pnand %p177, %p178
      %p180 = pneg %p179
      // Predicated region
      $region9: #{tpu_custom_call.1} parent=5 // pred_check
        _
      $region10: #{tpu_custom_call.1} parent=5 // pred_check_branch
        %182 = sbr.rel (%p179) target = $region12
      $region11: #{tpu_custom_call.1} parent=5 // pred_region
        %s183 = ssub.s32 %s19, 1
        // Predicated region
        $region13: #{tpu_custom_call.1} parent=11 // pred_check
          %p184 = pneg %p78
        $region14: #{tpu_custom_call.1} parent=11 // pred_check_branch
          %186 = sbr.rel (%p184) target = $region16
        $region15: #{tpu_custom_call.1} parent=11 // pred_region
          %s188 = ssub.s32 256, 256
          %189 = vsyncadd [#allocation7], %s188
          %s190 = sshll.u32 [#allocation6], 4
          %s191 = int_to_ptr.vmem [resolvable:$true] %s190
          %196 = dma.hbm_to_vmem [thread:$0]  %s1, 256, %s191, [#allocation7], 64, 64, 4
        $region16: #{tpu_custom_call.1} parent=11 // pred_fallthru
          _
        // Predicated region
        $region17: #{tpu_custom_call.1} parent=11 // pred_check
          %p197 = pneg %p99
        $region18: #{tpu_custom_call.1} parent=11 // pred_check_branch
          %199 = sbr.rel (%p197) target = $region20
        $region19: #{tpu_custom_call.1} parent=11 // pred_region
          %s201 = ssub.s32 16, 16
          %202 = vsyncadd [#allocation7], %s201
          %s204 = sshll.u32 [#allocation8], 4
          %s205 = int_to_ptr.vmem [resolvable:$true] %s204
          %207 = dma.hbm_to_vmem [thread:$0]  %s2, 16, %s205, [#allocation7]
        $region20: #{tpu_custom_call.1} parent=11 // pred_fallthru
          _
        // Predicated region
        $region21: #{tpu_custom_call.1} parent=11 // pred_check
          %p208 = pneg %p120
        $region22: #{tpu_custom_call.1} parent=11 // pred_check_branch
          %210 = sbr.rel (%p208) target = $region24
        $region23: #{tpu_custom_call.1} parent=11 // pred_region
          %s212 = ssub.s32 256, 256
          %213 = vsyncadd [#allocation10], %s212
          %s214 = sshll.u32 [#allocation9], 4
          %s215 = int_to_ptr.vmem [resolvable:$true] %s214
          %220 = dma.hbm_to_vmem [thread:$0]  %s3, 256, %s215, [#allocation10], 64, 64, 4
        $region24: #{tpu_custom_call.1} parent=11 // pred_fallthru
          _
        // Predicated region
        $region25: #{tpu_custom_call.1} parent=11 // pred_check
          %p221 = pneg %p141
        $region26: #{tpu_custom_call.1} parent=11 // pred_check_branch
          %223 = sbr.rel (%p221) target = $region28
        $region27: #{tpu_custom_call.1} parent=11 // pred_region
          %s225 = ssub.s32 16, 16
          %226 = vsyncadd [#allocation10], %s225
          %s228 = sshll.u32 [#allocation11], 4
          %s229 = int_to_ptr.vmem [resolvable:$true] %s228
          %231 = dma.hbm_to_vmem [thread:$0]  %s4, 16, %s229, [#allocation10]
        $region28: #{tpu_custom_call.1} parent=11 // pred_fallthru
          _
      $region12: #{tpu_custom_call.1} parent=5 // pred_fallthru
        _
      %p232 = scmp.lt.s32.totalorder %s19, 2
      // Predicated region
      $region29: #{tpu_custom_call.1} parent=5 // pred_check
        %p233 = pneg %p232
      $region30: #{tpu_custom_call.1} parent=5 // pred_check_branch
        %235 = sbr.rel (%p233) target = $region32
      $region31: #{tpu_custom_call.1} parent=5 // pred_region
        // Predicated region
        $region33: #{tpu_custom_call.1} parent=31 // pred_check
          %p236 = pneg %p51
        $region34: #{tpu_custom_call.1} parent=31 // pred_check_branch
          %238 = sbr.rel (%p236) target = $region36
        $region35: #{tpu_custom_call.1} parent=31 // pred_region
          %s239 = sand.u32 %s41, 1
          %s240 = scalar_lea.sflag [#allocation4], %s239
          %s241 = sand.u32 %s41, 1
          %s242 = smul.addr %s241, 8
          %s243 = scalar_lea.vmem [#allocation3], %s242
          %s245 = ssub.s32 128, 128
          %246 = vsyncadd %s240, %s245
          %s247 = smul.addr %s26, 2
          %s248 = smul.addr %s247, 64
          %s249 = scalar_lea.hbm %s0, %s248
          %s250 = sshll.u32 %s243, 4
          %s251 = int_to_ptr.vmem [resolvable:$true] %s250
          %256 = dma.hbm_to_vmem [thread:$0]  %s249, 128, %s251, %s240, 64, 64, 4
        $region36: #{tpu_custom_call.1} parent=31 // pred_fallthru
          _
      $region32: #{tpu_custom_call.1} parent=5 // pred_fallthru
        _
      %p257 = scmp.le.s32.totalorder 1, %s19
      %p258 = scmp.lt.s32.totalorder %s19, 3
      %p259 = pnand %p257, %p258
      %p260 = pneg %p259
      // Predicated region
      $region37: #{tpu_custom_call.1} parent=5 // pred_check
        _
      $region38: #{tpu_custom_call.1} parent=5 // pred_check_branch
        %262 = sbr.rel (%p259) target = $region40
      $region39: #{tpu_custom_call.1} parent=5 // pred_region
        %s263 = ssub.s32 %s19, 1
        %s264 = sand.u32 %s44, 1
        %s265 = scalar_lea.sflag [#allocation4], %s264
        %s266 = sand.u32 %s44, 1
        %s267 = smul.addr %s266, 8
        %s268 = scalar_lea.vmem [#allocation3], %s267
        // Predicated region
        $region41: #{tpu_custom_call.1} parent=39 // pred_check
          %p269 = pneg %p57
        $region42: #{tpu_custom_call.1} parent=39 // pred_check_branch
          %271 = sbr.rel (%p269) target = $region44
        $region43: #{tpu_custom_call.1} parent=39 // pred_region
          %272 = dma.done %s265, 128
        $region44: #{tpu_custom_call.1} parent=39 // pred_fallthru
          _
        // Predicated region
        $region45: #{tpu_custom_call.1} parent=39 // pred_check
          %p273 = pneg %p78
        $region46: #{tpu_custom_call.1} parent=39 // pred_check_branch
          %275 = sbr.rel (%p273) target = $region48
        $region47: #{tpu_custom_call.1} parent=39 // pred_region
          %276 = dma.done [#allocation7], 256
        $region48: #{tpu_custom_call.1} parent=39 // pred_fallthru
          _
        // Predicated region
        $region49: #{tpu_custom_call.1} parent=39 // pred_check
          %p277 = pneg %p99
        $region50: #{tpu_custom_call.1} parent=39 // pred_check_branch
          %279 = sbr.rel (%p277) target = $region52
        $region51: #{tpu_custom_call.1} parent=39 // pred_region
          %280 = dma.done [#allocation7], 16
        $region52: #{tpu_custom_call.1} parent=39 // pred_fallthru
          _
        // Predicated region
        $region53: #{tpu_custom_call.1} parent=39 // pred_check
          %p281 = pneg %p120
        $region54: #{tpu_custom_call.1} parent=39 // pred_check_branch
          %283 = sbr.rel (%p281) target = $region56
        $region55: #{tpu_custom_call.1} parent=39 // pred_region
          %284 = dma.done [#allocation10], 256
        $region56: #{tpu_custom_call.1} parent=39 // pred_fallthru
          _
        // Predicated region
        $region57: #{tpu_custom_call.1} parent=39 // pred_check
          %p285 = pneg %p141
        $region58: #{tpu_custom_call.1} parent=39 // pred_check_branch
          %287 = sbr.rel (%p285) target = $region60
        $region59: #{tpu_custom_call.1} parent=39 // pred_region
          %288 = dma.done [#allocation10], 16
        $region60: #{tpu_custom_call.1} parent=39 // pred_fallthru
          _
        %s289 = sand.u32 %s44, 1
        %s290 = scalar_lea.sflag [#allocation4], %s289
        %s291 = sand.u32 %s44, 1
        %s292 = smul.addr %s291, 8
        %s293 = scalar_lea.vmem [#allocation3], %s292
        %p294 = pneg %p57
        %p295 = pneg %p54
        %p296 = pneg %p78
        %p297 = pneg %p75
        %p298 = pneg %p99
        %p299 = pneg %p96
        %p300 = pneg %p120
        %p301 = pneg %p117
        %p302 = pneg %p141
        %p303 = pneg %p138
        %p304 = pneg %p169
        %p305 = pneg %p166
        %s306 = sand.u32 %s156, 1
        %s307 = scalar_lea.sflag [#allocation5], %s306
        %s308 = sand.u32 %s156, 1
        %s309 = smul.addr %s308, 16
        %s310 = scalar_lea.vmem [#allocation12], %s309
        %s311 = smul.u32 2, %s29
        %v313 = vld [vmem:[%s268] sm:$0xf]
        %v314 = vld [vmem:[%s268 + $0x4] sm:$0xf]
        %v315 = vld [vmem:[#allocation6] sm:$0xf]
        %v316 = vld [vmem:[#allocation6 + $0x4] sm:$0xf]
        %v317 = vld [vmem:[#allocation6 + $0x8] sm:$0xf]
        %v318 = vld [vmem:[#allocation6 + $0xc] sm:$0xf]
        %v319 = vld [vmem:[#allocation8] sm:$0x1]
        %v321 = vlaneseq
        %v322 = vshrl.u32 %v321, 7
        %v323 = vsub.s32 0, %v322
        %v324 = vrot.slane %v319, %v323
        %v328 = vunpack.c.l.b16 %v313
        %v329 = vunpack.c.l.b16 %v314
        %v330 = vpack.c.b16 %v329, %v328
        %v335 = vunpack.c.l.b16 %v315
        %v336 = vunpack.c.l.b16 %v316
        %v337 = vunpack.c.l.b16 %v317
        %v338 = vunpack.c.l.b16 %v318
        %v339 = vpack.c.b16 %v336, %v335
        %v340 = vpack.c.b16 %v338, %v337
        %vm343 = vcmask 261120
        %v345 = vsel %vm343, %v330, 0
        %347 = vmatprep.subr.bf16.mxu0 0
        %348 = vmatpush1.bf16.msra.mxu0 %v339
        %349 = vmatprep.subr.bf16.mxu0 0
        %350 = vmatpush1.bf16.msra.mxu0 %v340
        %351 = vmatprep.subr.bf16.mxu0 0
        %352 = vmatpush1.bf16.msra.mxu0 0
        %353 = vmatprep.subr.bf16.mxu0 0
        %354 = vmatpush1.bf16.msra.mxu0 0
        %355 = vmatprep.subr.bf16.mxu0 0
        %356 = vmatpush1.bf16.msra.mxu0 0
        %357 = vmatprep.subr.bf16.mxu0 0
        %358 = vmatpush1.bf16.msra.mxu0 0
        %359 = vmatprep.subr.bf16.mxu0 0
        %360 = vmatpush1.bf16.msra.mxu0 0
        %361 = vmatprep.subr.bf16.mxu0 0
        %362 = vmatpush1.bf16.msra.mxu0 0
        %363 = vmatprep.subr.bf16.mxu0 0
        %364 = vmatpush1.bf16.msra.mxu0 0
        %365 = vmatprep.subr.bf16.mxu0 0
        %366 = vmatpush1.bf16.msra.mxu0 0
        %367 = vmatprep.subr.bf16.mxu0 0
        %368 = vmatpush1.bf16.msra.mxu0 0
        %369 = vmatprep.subr.bf16.mxu0 0
        %370 = vmatpush1.bf16.msra.mxu0 0
        %371 = vmatprep.subr.bf16.mxu0 0
        %372 = vmatpush1.bf16.msra.mxu0 0
        %373 = vmatprep.subr.bf16.mxu0 0
        %374 = vmatpush1.bf16.msra.mxu0 0
        %375 = vmatprep.subr.bf16.mxu0 0
        %376 = vmatpush1.bf16.msra.mxu0 0
        %377 = vmatprep.subr.bf16.mxu0 0
        %378 = vmatpush1.bf16.msra.mxu0 0
        %379 = vmatprep.mubr.bf16.mxu0 0
        %380 = vmatmul.mubr.bf16.gmra.mrb[0].mxu0 %v345
        %v381 = vpop.f32.mrb[0].mxu0
        %v382 = vadd.f32 %v324, %v381
        %v383 = vpop.f32.mrb[0].mxu0
        %v384 = vpop.f32.mrb[0].mxu0
        %v385 = vadd.f32 %v324, %v384
        %v386 = vpop.f32.mrb[0].mxu0
        %387 = vdwg.mxu0
        %v388 = vpack.c.bf16 %v385, %v382
        %390 = vrot.lane.b32.xlu0 %v388, 96
        %v391 = vpop.permute.xlu0 %390
        %vm392 = vcmask 64512
        %v394 = vsel %vm392, %v388, 0
        %v397 = vsel %vm392, %v391, 0
        %399 = vmatprep.subr.bf16.mxu0 0
        %400 = vmatpush1.bf16.xpose.msra.mxu0 %v397
        %401 = vmatprep.subr.bf16.mxu0 0
        %402 = vmatpush1.bf16.xpose.msra.mxu0 0
        %403 = vmatprep.subr.bf16.mxu0 0
        %404 = vmatpush1.bf16.xpose.msra.mxu0 0
        %405 = vmatprep.subr.bf16.mxu0 0
        %406 = vmatpush1.bf16.xpose.msra.mxu0 0
        %407 = vmatprep.subr.bf16.mxu0 0
        %408 = vmatpush1.bf16.xpose.msra.mxu0 0
        %409 = vmatprep.subr.bf16.mxu0 0
        %410 = vmatpush1.bf16.xpose.msra.mxu0 0
        %411 = vmatprep.subr.bf16.mxu0 0
        %412 = vmatpush1.bf16.xpose.msra.mxu0 0
        %413 = vmatprep.subr.bf16.mxu0 0
        %414 = vmatpush1.bf16.xpose.msra.mxu0 0
        %415 = vmatprep.subr.bf16.mxu0 0
        %416 = vmatpush1.bf16.xpose.msra.mxu0 0
        %417 = vmatprep.subr.bf16.mxu0 0
        %418 = vmatpush1.bf16.xpose.msra.mxu0 0
        %419 = vmatprep.subr.bf16.mxu0 0
        %420 = vmatpush1.bf16.xpose.msra.mxu0 0
        %421 = vmatprep.subr.bf16.mxu0 0
        %422 = vmatpush1.bf16.xpose.msra.mxu0 0
        %423 = vmatprep.subr.bf16.mxu0 0
        %424 = vmatpush1.bf16.xpose.msra.mxu0 0
        %425 = vmatprep.subr.bf16.mxu0 0
        %426 = vmatpush1.bf16.xpose.msra.mxu0 0
        %427 = vmatprep.subr.bf16.mxu0 0
        %428 = vmatpush1.bf16.xpose.msra.mxu0 0
        %429 = vmatprep.subr.bf16.mxu0 0
        %430 = vmatpush1.bf16.xpose.msra.mxu0 0
        %431 = vmatprep.mubr.bf16.mxu0 0
        %432 = vmatmul.mubr.bf16.gmra.mrb[0].mxu0 %v394
        %v433 = vpop.f32.mrb[0].mxu0
        %v434 = vadd.f32 0.0, %v433
        %v435 = vpop.f32.mrb[0].mxu0
        %v436 = vpop.f32.mrb[0].mxu0
        %v437 = vadd.f32 0.0, %v436
        %v438 = vpop.f32.mrb[0].mxu0
        %439 = vdwg.mxu0
        %vm440 = vcmask 130048
        %v441 = vsel %vm440, %v434, -inf
        %442 = vmax.xlane.f32.xlu0 %v441
        %v443 = vpop.xlane.xlu0 %442
        %v444 = vsel %vm440, %v437, -inf
        %445 = vmax.xlane.f32.xlu0 %v444
        %v446 = vpop.xlane.xlu0 %445
        %v447 = vsub.f32 %v434, %v443
        %v448 = vsub.f32 %v437, %v446
        %v449 = vmul.f32 %v447, 1.442695
        %v450 = vpow.pop %v449
        %v451 = vmul.f32 %v448, 1.442695
        %v452 = vpow.pop %v451
        %v453 = vsel %vm440, %v450, 0.0
        %454 = vadd.xlane.f32.xlu0 %v453
        %v455 = vpop.xlane.xlu0 %454
        %v456 = vsel %vm440, %v452, 0.0
        %457 = vadd.xlane.f32.xlu0 %v456
        %v458 = vpop.xlane.xlu0 %457
        %v459 = vpack.c.bf16 %v452, %v450
        %460 = vrot.lane.b32.xlu0 %v388, 64
        %v461 = vpop.permute.xlu0 %460
        %v464 = vsel %vm440, %v459, 0
        %466 = vmatprep.subr.bf16.mxu0 0
        %467 = vmatpush1.bf16.msra.mxu0 %v461
        %468 = vmatprep.subr.bf16.mxu0 0
        %469 = vmatpush1.bf16.msra.mxu0 0
        %470 = vmatprep.subr.bf16.mxu0 0
        %471 = vmatpush1.bf16.msra.mxu0 0
        %472 = vmatprep.subr.bf16.mxu0 0
        %473 = vmatpush1.bf16.msra.mxu0 0
        %474 = vmatprep.subr.bf16.mxu0 0
        %475 = vmatpush1.bf16.msra.mxu0 0
        %476 = vmatprep.subr.bf16.mxu0 0
        %477 = vmatpush1.bf16.msra.mxu0 0
        %478 = vmatprep.subr.bf16.mxu0 0
        %479 = vmatpush1.bf16.msra.mxu0 0
        %480 = vmatprep.subr.bf16.mxu0 0
        %481 = vmatpush1.bf16.msra.mxu0 0
        %482 = vmatprep.subr.bf16.mxu0 0
        %483 = vmatpush1.bf16.msra.mxu0 0
        %484 = vmatprep.subr.bf16.mxu0 0
        %485 = vmatpush1.bf16.msra.mxu0 0
        %486 = vmatprep.subr.bf16.mxu0 0
        %487 = vmatpush1.bf16.msra.mxu0 0
        %488 = vmatprep.subr.bf16.mxu0 0
        %489 = vmatpush1.bf16.msra.mxu0 0
        %490 = vmatprep.subr.bf16.mxu0 0
        %491 = vmatpush1.bf16.msra.mxu0 0
        %492 = vmatprep.subr.bf16.mxu0 0
        %493 = vmatpush1.bf16.msra.mxu0 0
        %494 = vmatprep.subr.bf16.mxu0 0
        %495 = vmatpush1.bf16.msra.mxu0 0
        %496 = vmatprep.subr.bf16.mxu0 0
        %497 = vmatpush1.bf16.msra.mxu0 0
        %498 = vmatprep.mubr.bf16.mxu0 0
        %499 = vmatmul.mubr.bf16.gmra.mrb[0].mxu0 %v464
        %v500 = vpop.f32.mrb[0].mxu0
        %v501 = vadd.f32 0.0, %v500
        %v502 = vpop.f32.mrb[0].mxu0
        %v503 = vpop.f32.mrb[0].mxu0
        %v504 = vadd.f32 0.0, %v503
        %v505 = vpop.f32.mrb[0].mxu0
        %506 = vdwg.mxu0
        %v507 = vrcp.pop %v455
        %v508 = vrcp.pop %v458
        %v509 = vmul.f32 %v501, %v507
        %v510 = vmul.f32 %v504, %v508
        %v511 = vpack.c.bf16 %v510, %v509
        %512 = vrot.lane.b32.xlu0 %v388, 120
        %v513 = vpop.permute.xlu0 %512
        %514 = vrot.lane.b32.xlu0 %v388, 88
        %v515 = vpop.permute.xlu0 %514
        %v517 = vsel %vm392, %v513, 0
        %v520 = vsel %vm392, %v515, 0
        %522 = vmatprep.subr.bf16.mxu0 0
        %523 = vmatpush1.bf16.xpose.msra.mxu0 %v520
        %524 = vmatprep.subr.bf16.mxu0 0
        %525 = vmatpush1.bf16.xpose.msra.mxu0 0
        %526 = vmatprep.subr.bf16.mxu0 0
        %527 = vmatpush1.bf16.xpose.msra.mxu0 0
        %528 = vmatprep.subr.bf16.mxu0 0
        %529 = vmatpush1.bf16.xpose.msra.mxu0 0
        %530 = vmatprep.subr.bf16.mxu0 0
        %531 = vmatpush1.bf16.xpose.msra.mxu0 0
        %532 = vmatprep.subr.bf16.mxu0 0
        %533 = vmatpush1.bf16.xpose.msra.mxu0 0
        %534 = vmatprep.subr.bf16.mxu0 0
        %535 = vmatpush1.bf16.xpose.msra.mxu0 0
        %536 = vmatprep.subr.bf16.mxu0 0
        %537 = vmatpush1.bf16.xpose.msra.mxu0 0
        %538 = vmatprep.subr.bf16.mxu0 0
        %539 = vmatpush1.bf16.xpose.msra.mxu0 0
        %540 = vmatprep.subr.bf16.mxu0 0
        %541 = vmatpush1.bf16.xpose.msra.mxu0 0
        %542 = vmatprep.subr.bf16.mxu0 0
        %543 = vmatpush1.bf16.xpose.msra.mxu0 0
        %544 = vmatprep.subr.bf16.mxu0 0
        %545 = vmatpush1.bf16.xpose.msra.mxu0 0
        %546 = vmatprep.subr.bf16.mxu0 0
        %547 = vmatpush1.bf16.xpose.msra.mxu0 0
        %548 = vmatprep.subr.bf16.mxu0 0
        %549 = vmatpush1.bf16.xpose.msra.mxu0 0
        %550 = vmatprep.subr.bf16.mxu0 0
        %551 = vmatpush1.bf16.xpose.msra.mxu0 0
        %552 = vmatprep.subr.bf16.mxu0 0
        %553 = vmatpush1.bf16.xpose.msra.mxu0 0
        %554 = vmatprep.mubr.bf16.mxu0 0
        %555 = vmatmul.mubr.bf16.gmra.mrb[0].mxu0 %v517
        %v556 = vpop.f32.mrb[0].mxu0
        %v557 = vadd.f32 0.0, %v556
        %v558 = vpop.f32.mrb[0].mxu0
        %v559 = vpop.f32.mrb[0].mxu0
        %v560 = vadd.f32 0.0, %v559
        %v561 = vpop.f32.mrb[0].mxu0
        %562 = vdwg.mxu0
        %v563 = vsel %vm440, %v557, -inf
        %564 = vmax.xlane.f32.xlu0 %v563
        %v565 = vpop.xlane.xlu0 %564
        %v566 = vsel %vm440, %v560, -inf
        %567 = vmax.xlane.f32.xlu0 %v566
        %v568 = vpop.xlane.xlu0 %567
        %v569 = vsub.f32 %v557, %v565
        %v570 = vsub.f32 %v560, %v568
        %v571 = vmul.f32 %v569, 1.442695
        %v572 = vpow.pop %v571
        %v573 = vmul.f32 %v570, 1.442695
        %v574 = vpow.pop %v573
        %v575 = vsel %vm440, %v572, 0.0
        %576 = vadd.xlane.f32.xlu0 %v575
        %v577 = vpop.xlane.xlu0 %576
        %v578 = vsel %vm440, %v574, 0.0
        %579 = vadd.xlane.f32.xlu0 %v578
        %v580 = vpop.xlane.xlu0 %579
        %v581 = vpack.c.bf16 %v574, %v572
        %582 = vrot.lane.b32.xlu0 %v388, 56
        %v583 = vpop.permute.xlu0 %582
        %v586 = vsel %vm440, %v581, 0
        %588 = vmatprep.subr.bf16.mxu0 0
        %589 = vmatpush1.bf16.msra.mxu0 %v583
        %590 = vmatprep.subr.bf16.mxu0 0
        %591 = vmatpush1.bf16.msra.mxu0 0
        %592 = vmatprep.subr.bf16.mxu0 0
        %593 = vmatpush1.bf16.msra.mxu0 0
        %594 = vmatprep.subr.bf16.mxu0 0
        %595 = vmatpush1.bf16.msra.mxu0 0
        %596 = vmatprep.subr.bf16.mxu0 0
        %597 = vmatpush1.bf16.msra.mxu0 0
        %598 = vmatprep.subr.bf16.mxu0 0
        %599 = vmatpush1.bf16.msra.mxu0 0
        %600 = vmatprep.subr.bf16.mxu0 0
        %601 = vmatpush1.bf16.msra.mxu0 0
        %602 = vmatprep.subr.bf16.mxu0 0
        %603 = vmatpush1.bf16.msra.mxu0 0
        %604 = vmatprep.subr.bf16.mxu0 0
        %605 = vmatpush1.bf16.msra.mxu0 0
        %606 = vmatprep.subr.bf16.mxu0 0
        %607 = vmatpush1.bf16.msra.mxu0 0
        %608 = vmatprep.subr.bf16.mxu0 0
        %609 = vmatpush1.bf16.msra.mxu0 0
        %610 = vmatprep.subr.bf16.mxu0 0
        %611 = vmatpush1.bf16.msra.mxu0 0
        %612 = vmatprep.subr.bf16.mxu0 0
        %613 = vmatpush1.bf16.msra.mxu0 0
        %614 = vmatprep.subr.bf16.mxu0 0
        %615 = vmatpush1.bf16.msra.mxu0 0
        %616 = vmatprep.subr.bf16.mxu0 0
        %617 = vmatpush1.bf16.msra.mxu0 0
        %618 = vmatprep.subr.bf16.mxu0 0
        %619 = vmatpush1.bf16.msra.mxu0 0
        %620 = vmatprep.mubr.bf16.mxu0 0
        %621 = vmatmul.mubr.bf16.gmra.mrb[0].mxu0 %v586
        %v622 = vpop.f32.mrb[0].mxu0
        %v623 = vadd.f32 0.0, %v622
        %v624 = vpop.f32.mrb[0].mxu0
        %v625 = vpop.f32.mrb[0].mxu0
        %v626 = vadd.f32 0.0, %v625
        %v627 = vpop.f32.mrb[0].mxu0
        %628 = vdwg.mxu0
        %v629 = vrcp.pop %v577
        %v630 = vrcp.pop %v580
        %v631 = vmul.f32 %v623, %v629
        %v632 = vmul.f32 %v626, %v630
        %v633 = vpack.c.bf16 %v632, %v631
        %635 = vrot.lane.b32.xlu0 %v633, 8
        %v636 = vpop.permute.xlu0 %635
        %v639 = vsel %vm392, %v511, %v636
        %641 = vst.msk [vmem:[#allocation2] sm:$0xff] %vm440, %v639
        %642 = vrot.lane.b32.xlu0 %v388, 112
        %v643 = vpop.permute.xlu0 %642
        %644 = vrot.lane.b32.xlu0 %v388, 80
        %v645 = vpop.permute.xlu0 %644
        %v647 = vsel %vm392, %v643, 0
        %v650 = vsel %vm392, %v645, 0
        %652 = vmatprep.subr.bf16.mxu0 0
        %653 = vmatpush1.bf16.xpose.msra.mxu0 %v650
        %654 = vmatprep.subr.bf16.mxu0 0
        %655 = vmatpush1.bf16.xpose.msra.mxu0 0
        %656 = vmatprep.subr.bf16.mxu0 0
        %657 = vmatpush1.bf16.xpose.msra.mxu0 0
        %658 = vmatprep.subr.bf16.mxu0 0
        %659 = vmatpush1.bf16.xpose.msra.mxu0 0
        %660 = vmatprep.subr.bf16.mxu0 0
        %661 = vmatpush1.bf16.xpose.msra.mxu0 0
        %662 = vmatprep.subr.bf16.mxu0 0
        %663 = vmatpush1.bf16.xpose.msra.mxu0 0
        %664 = vmatprep.subr.bf16.mxu0 0
        %665 = vmatpush1.bf16.xpose.msra.mxu0 0
        %666 = vmatprep.subr.bf16.mxu0 0
        %667 = vmatpush1.bf16.xpose.msra.mxu0 0
        %668 = vmatprep.subr.bf16.mxu0 0
        %669 = vmatpush1.bf16.xpose.msra.mxu0 0
        %670 = vmatprep.subr.bf16.mxu0 0
        %671 = vmatpush1.bf16.xpose.msra.mxu0 0
        %672 = vmatprep.subr.bf16.mxu0 0
        %673 = vmatpush1.bf16.xpose.msra.mxu0 0
        %674 = vmatprep.subr.bf16.mxu0 0
        %675 = vmatpush1.bf16.xpose.msra.mxu0 0
        %676 = vmatprep.subr.bf16.mxu0 0
        %677 = vmatpush1.bf16.xpose.msra.mxu0 0
        %678 = vmatprep.subr.bf16.mxu0 0
        %679 = vmatpush1.bf16.xpose.msra.mxu0 0
        %680 = vmatprep.subr.bf16.mxu0 0
        %681 = vmatpush1.bf16.xpose.msra.mxu0 0
        %682 = vmatprep.subr.bf16.mxu0 0
        %683 = vmatpush1.bf16.xpose.msra.mxu0 0
        %684 = vmatprep.mubr.bf16.mxu0 0
        %685 = vmatmul.mubr.bf16.gmra.mrb[0].mxu0 %v647
        %v686 = vpop.f32.mrb[0].mxu0
        %v687 = vadd.f32 0.0, %v686
        %v688 = vpop.f32.mrb[0].mxu0
        %v689 = vpop.f32.mrb[0].mxu0
        %v690 = vadd.f32 0.0, %v689
        %v691 = vpop.f32.mrb[0].mxu0
        %692 = vdwg.mxu0
        %v693 = vsel %vm440, %v687, -inf
        %694 = vmax.xlane.f32.xlu0 %v693
        %v695 = vpop.xlane.xlu0 %694
        %v696 = vsel %vm440, %v690, -inf
        %697 = vmax.xlane.f32.xlu0 %v696
        %v698 = vpop.xlane.xlu0 %697
        %v699 = vsub.f32 %v687, %v695
        %v700 = vsub.f32 %v690, %v698
        %v701 = vmul.f32 %v699, 1.442695
        %v702 = vpow.pop %v701
        %v703 = vmul.f32 %v700, 1.442695
        %v704 = vpow.pop %v703
        %v705 = vsel %vm440, %v702, 0.0
        %706 = vadd.xlane.f32.xlu0 %v705
        %v707 = vpop.xlane.xlu0 %706
        %v708 = vsel %vm440, %v704, 0.0
        %709 = vadd.xlane.f32.xlu0 %v708
        %v710 = vpop.xlane.xlu0 %709
        %v711 = vpack.c.bf16 %v704, %v702
        %712 = vrot.lane.b32.xlu0 %v388, 48
        %v713 = vpop.permute.xlu0 %712
        %v716 = vsel %vm440, %v711, 0
        %718 = vmatprep.subr.bf16.mxu0 0
        %719 = vmatpush1.bf16.msra.mxu0 %v713
        %720 = vmatprep.subr.bf16.mxu0 0
        %721 = vmatpush1.bf16.msra.mxu0 0
        %722 = vmatprep.subr.bf16.mxu0 0
        %723 = vmatpush1.bf16.msra.mxu0 0
        %724 = vmatprep.subr.bf16.mxu0 0
        %725 = vmatpush1.bf16.msra.mxu0 0
        %726 = vmatprep.subr.bf16.mxu0 0
        %727 = vmatpush1.bf16.msra.mxu0 0
        %728 = vmatprep.subr.bf16.mxu0 0
        %729 = vmatpush1.bf16.msra.mxu0 0
        %730 = vmatprep.subr.bf16.mxu0 0
        %731 = vmatpush1.bf16.msra.mxu0 0
        %732 = vmatprep.subr.bf16.mxu0 0
        %733 = vmatpush1.bf16.msra.mxu0 0
        %734 = vmatprep.subr.bf16.mxu0 0
        %735 = vmatpush1.bf16.msra.mxu0 0
        %736 = vmatprep.subr.bf16.mxu0 0
        %737 = vmatpush1.bf16.msra.mxu0 0
        %738 = vmatprep.subr.bf16.mxu0 0
        %739 = vmatpush1.bf16.msra.mxu0 0
        %740 = vmatprep.subr.bf16.mxu0 0
        %741 = vmatpush1.bf16.msra.mxu0 0
        %742 = vmatprep.subr.bf16.mxu0 0
        %743 = vmatpush1.bf16.msra.mxu0 0
        %744 = vmatprep.subr.bf16.mxu0 0
        %745 = vmatpush1.bf16.msra.mxu0 0
        %746 = vmatprep.subr.bf16.mxu0 0
        %747 = vmatpush1.bf16.msra.mxu0 0
        %748 = vmatprep.subr.bf16.mxu0 0
        %749 = vmatpush1.bf16.msra.mxu0 0
        %750 = vmatprep.mubr.bf16.mxu0 0
        %751 = vmatmul.mubr.bf16.gmra.mrb[0].mxu0 %v716
        %v752 = vpop.f32.mrb[0].mxu0
        %v753 = vadd.f32 0.0, %v752
        %v754 = vpop.f32.mrb[0].mxu0
        %v755 = vpop.f32.mrb[0].mxu0
        %v756 = vadd.f32 0.0, %v755
        %v757 = vpop.f32.mrb[0].mxu0
        %758 = vdwg.mxu0
        %v759 = vrcp.pop %v707
        %v760 = vrcp.pop %v710
        %v761 = vmul.f32 %v753, %v759
        %v762 = vmul.f32 %v756, %v760
        %v763 = vpack.c.bf16 %v762, %v761
        %764 = vrot.lane.b32.xlu0 %v388, 104
        %v765 = vpop.permute.xlu0 %764
        %766 = vrot.lane.b32.xlu0 %v388, 72
        %v767 = vpop.permute.xlu0 %766
        %v769 = vsel %vm392, %v765, 0
        %v772 = vsel %vm392, %v767, 0
        %774 = vmatprep.subr.bf16.mxu0 0
        %775 = vmatpush1.bf16.xpose.msra.mxu0 %v772
        %776 = vmatprep.subr.bf16.mxu0 0
        %777 = vmatpush1.bf16.xpose.msra.mxu0 0
        %778 = vmatprep.subr.bf16.mxu0 0
        %779 = vmatpush1.bf16.xpose.msra.mxu0 0
        %780 = vmatprep.subr.bf16.mxu0 0
        %781 = vmatpush1.bf16.xpose.msra.mxu0 0
        %782 = vmatprep.subr.bf16.mxu0 0
        %783 = vmatpush1.bf16.xpose.msra.mxu0 0
        %784 = vmatprep.subr.bf16.mxu0 0
        %785 = vmatpush1.bf16.xpose.msra.mxu0 0
        %786 = vmatprep.subr.bf16.mxu0 0
        %787 = vmatpush1.bf16.xpose.msra.mxu0 0
        %788 = vmatprep.subr.bf16.mxu0 0
        %789 = vmatpush1.bf16.xpose.msra.mxu0 0
        %790 = vmatprep.subr.bf16.mxu0 0
        %791 = vmatpush1.bf16.xpose.msra.mxu0 0
        %792 = vmatprep.subr.bf16.mxu0 0
        %793 = vmatpush1.bf16.xpose.msra.mxu0 0
        %794 = vmatprep.subr.bf16.mxu0 0
        %795 = vmatpush1.bf16.xpose.msra.mxu0 0
        %796 = vmatprep.subr.bf16.mxu0 0
        %797 = vmatpush1.bf16.xpose.msra.mxu0 0
        %798 = vmatprep.subr.bf16.mxu0 0
        %799 = vmatpush1.bf16.xpose.msra.mxu0 0
        %800 = vmatprep.subr.bf16.mxu0 0
        %801 = vmatpush1.bf16.xpose.msra.mxu0 0
        %802 = vmatprep.subr.bf16.mxu0 0
        %803 = vmatpush1.bf16.xpose.msra.mxu0 0
        %804 = vmatprep.subr.bf16.mxu0 0
        %805 = vmatpush1.bf16.xpose.msra.mxu0 0
        %806 = vmatprep.mubr.bf16.mxu0 0
        %807 = vmatmul.mubr.bf16.gmra.mrb[0].mxu0 %v769
        %v808 = vpop.f32.mrb[0].mxu0
        %v809 = vadd.f32 0.0, %v808
        %v810 = vpop.f32.mrb[0].mxu0
        %v811 = vpop.f32.mrb[0].mxu0
        %v812 = vadd.f32 0.0, %v811
        %v813 = vpop.f32.mrb[0].mxu0
        %814 = vdwg.mxu0
        %v815 = vsel %vm440, %v809, -inf
        %816 = vmax.xlane.f32.xlu0 %v815
        %v817 = vpop.xlane.xlu0 %816
        %v818 = vsel %vm440, %v812, -inf
        %819 = vmax.xlane.f32.xlu0 %v818
        %v820 = vpop.xlane.xlu0 %819
        %v821 = vsub.f32 %v809, %v817
        %v822 = vsub.f32 %v812, %v820
        %v823 = vmul.f32 %v821, 1.442695
        %v824 = vpow.pop %v823
        %v825 = vmul.f32 %v822, 1.442695
        %v826 = vpow.pop %v825
        %v827 = vsel %vm440, %v824, 0.0
        %828 = vadd.xlane.f32.xlu0 %v827
        %v829 = vpop.xlane.xlu0 %828
        %v830 = vsel %vm440, %v826, 0.0
        %831 = vadd.xlane.f32.xlu0 %v830
        %v832 = vpop.xlane.xlu0 %831
        %v833 = vpack.c.bf16 %v826, %v824
        %834 = vrot.lane.b32.xlu0 %v388, 40
        %v835 = vpop.permute.xlu0 %834
        %v838 = vsel %vm440, %v833, 0
        %840 = vmatprep.subr.bf16.mxu0 0
        %841 = vmatpush1.bf16.msra.mxu0 %v835
        %842 = vmatprep.subr.bf16.mxu0 0
        %843 = vmatpush1.bf16.msra.mxu0 0
        %844 = vmatprep.subr.bf16.mxu0 0
        %845 = vmatpush1.bf16.msra.mxu0 0
        %846 = vmatprep.subr.bf16.mxu0 0
        %847 = vmatpush1.bf16.msra.mxu0 0
        %848 = vmatprep.subr.bf16.mxu0 0
        %849 = vmatpush1.bf16.msra.mxu0 0
        %850 = vmatprep.subr.bf16.mxu0 0
        %851 = vmatpush1.bf16.msra.mxu0 0
        %852 = vmatprep.subr.bf16.mxu0 0
        %853 = vmatpush1.bf16.msra.mxu0 0
        %854 = vmatprep.subr.bf16.mxu0 0
        %855 = vmatpush1.bf16.msra.mxu0 0
        %856 = vmatprep.subr.bf16.mxu0 0
        %857 = vmatpush1.bf16.msra.mxu0 0
        %858 = vmatprep.subr.bf16.mxu0 0
        %859 = vmatpush1.bf16.msra.mxu0 0
        %860 = vmatprep.subr.bf16.mxu0 0
        %861 = vmatpush1.bf16.msra.mxu0 0
        %862 = vmatprep.subr.bf16.mxu0 0
        %863 = vmatpush1.bf16.msra.mxu0 0
        %864 = vmatprep.subr.bf16.mxu0 0
        %865 = vmatpush1.bf16.msra.mxu0 0
        %866 = vmatprep.subr.bf16.mxu0 0
        %867 = vmatpush1.bf16.msra.mxu0 0
        %868 = vmatprep.subr.bf16.mxu0 0
        %869 = vmatpush1.bf16.msra.mxu0 0
        %870 = vmatprep.subr.bf16.mxu0 0
        %871 = vmatpush1.bf16.msra.mxu0 0
        %872 = vmatprep.mubr.bf16.mxu0 0
        %873 = vmatmul.mubr.bf16.gmra.mrb[0].mxu0 %v838
        %v874 = vpop.f32.mrb[0].mxu0
        %v875 = vadd.f32 0.0, %v874
        %v876 = vpop.f32.mrb[0].mxu0
        %v877 = vpop.f32.mrb[0].mxu0
        %v878 = vadd.f32 0.0, %v877
        %v879 = vpop.f32.mrb[0].mxu0
        %880 = vdwg.mxu0
        %v881 = vrcp.pop %v829
        %v882 = vrcp.pop %v832
        %v883 = vmul.f32 %v875, %v881
        %v884 = vmul.f32 %v878, %v882
        %v885 = vpack.c.bf16 %v884, %v883
        %887 = vrot.lane.b32.xlu0 %v885, 8
        %v888 = vpop.permute.xlu0 %887
        %v891 = vsel %vm392, %v763, %v888
        %893 = vrot.lane.b32.xlu0 %v891, 16
        %v894 = vpop.permute.xlu0 %893
        %vm896 = vcmask 261248
        %897 = vst.msk [vmem:[#allocation2] sm:$0xff] %vm896, %v894
        %v898 = vld [vmem:[#allocation2] sm:$0xff]
        %v899 = vld [vmem:[#allocation9] sm:$0xf]
        %v900 = vld [vmem:[#allocation9 + $0x4] sm:$0xf]
        %v901 = vld [vmem:[#allocation9 + $0x8] sm:$0xf]
        %v902 = vld [vmem:[#allocation9 + $0xc] sm:$0xf]
        %v903 = vld [vmem:[#allocation11] sm:$0x1]
        %v905 = vlaneseq
        %v906 = vshrl.u32 %v905, 7
        %v907 = vsub.s32 0, %v906
        %v908 = vrot.slane %v903, %v907
        %v914 = vunpack.c.l.b16 %v899
        %v915 = vunpack.c.l.b16 %v900
        %v916 = vunpack.c.l.b16 %v901
        %v917 = vunpack.c.l.b16 %v902
        %v918 = vpack.c.b16 %v915, %v914
        %v919 = vpack.c.b16 %v917, %v916
        %v923 = vsel %vm343, %v898, 0
        %925 = vmatprep.subr.bf16.mxu0 0
        %926 = vmatpush1.bf16.msra.mxu0 %v918
        %927 = vmatprep.subr.bf16.mxu0 0
        %928 = vmatpush1.bf16.msra.mxu0 %v919
        %929 = vmatprep.subr.bf16.mxu0 0
        %930 = vmatpush1.bf16.msra.mxu0 0
        %931 = vmatprep.subr.bf16.mxu0 0
        %932 = vmatpush1.bf16.msra.mxu0 0
        %933 = vmatprep.subr.bf16.mxu0 0
        %934 = vmatpush1.bf16.msra.mxu0 0
        %935 = vmatprep.subr.bf16.mxu0 0
        %936 = vmatpush1.bf16.msra.mxu0 0
        %937 = vmatprep.subr.bf16.mxu0 0
        %938 = vmatpush1.bf16.msra.mxu0 0
        %939 = vmatprep.subr.bf16.mxu0 0
        %940 = vmatpush1.bf16.msra.mxu0 0
        %941 = vmatprep.subr.bf16.mxu0 0
        %942 = vmatpush1.bf16.msra.mxu0 0
        %943 = vmatprep.subr.bf16.mxu0 0
        %944 = vmatpush1.bf16.msra.mxu0 0
        %945 = vmatprep.subr.bf16.mxu0 0
        %946 = vmatpush1.bf16.msra.mxu0 0
        %947 = vmatprep.subr.bf16.mxu0 0
        %948 = vmatpush1.bf16.msra.mxu0 0
        %949 = vmatprep.subr.bf16.mxu0 0
        %950 = vmatpush1.bf16.msra.mxu0 0
        %951 = vmatprep.subr.bf16.mxu0 0
        %952 = vmatpush1.bf16.msra.mxu0 0
        %953 = vmatprep.subr.bf16.mxu0 0
        %954 = vmatpush1.bf16.msra.mxu0 0
        %955 = vmatprep.subr.bf16.mxu0 0
        %956 = vmatpush1.bf16.msra.mxu0 0
        %957 = vmatprep.mubr.bf16.mxu0 0
        %958 = vmatmul.mubr.bf16.gmra.mrb[0].mxu0 %v923
        %v959 = vpop.f32.mrb[0].mxu0
        %v960 = vadd.f32 %v908, %v959
        %v961 = vpop.f32.mrb[0].mxu0
        %v962 = vpop.f32.mrb[0].mxu0
        %v963 = vadd.f32 %v908, %v962
        %v964 = vpop.f32.mrb[0].mxu0
        %965 = vdwg.mxu0
        %966 = vst.msk [vmem:[%s310] sm:$0xff] %vm343, %v960
        %967 = vst.msk [vmem:[%s310 + $0x8] sm:$0xff] %vm343, %v963
        %s968 = sand.u32 %s156, 1
        %s969 = scalar_lea.sflag [#allocation5], %s968
        %s970 = sand.u32 %s156, 1
        %s971 = smul.addr %s970, 16
        %s972 = scalar_lea.vmem [#allocation12], %s971
        // Predicated region
        $region61: #{tpu_custom_call.1} parent=39 // pred_check
          %p973 = pneg %p166
        $region62: #{tpu_custom_call.1} parent=39 // pred_check_branch
          %975 = sbr.rel (%p973) target = $region64
        $region63: #{tpu_custom_call.1} parent=39 // pred_region
          %s976 = smul.u32 2, %s29
          %s978 = ssub.s32 256, 256
          %979 = vsyncadd %s969, %s978
          %s980 = smul.addr %s28, 2
          %s981 = sadd.s32 %s976, %s980
          %s982 = smul.addr %s981, 128
          %s983 = scalar_lea.hbm %s5, %s982
          %s984 = sshll.u32 %s972, 4
          %s985 = int_to_ptr.vmem [resolvable:$true] %s984
          %990 = dma.vmem_to_hbm [thread:$0]  %s985, 256, %s983, %s969, 128, 128, 8
        $region64: #{tpu_custom_call.1} parent=39 // pred_fallthru
          _
      $region40: #{tpu_custom_call.1} parent=5 // pred_fallthru
        _
      %p991 = scmp.le.s32.totalorder 2, %s19
      // Predicated region
      $region65: #{tpu_custom_call.1} parent=5 // pred_check
        %p992 = pneg %p991
      $region66: #{tpu_custom_call.1} parent=5 // pred_check_branch
        %994 = sbr.rel (%p992) target = $region68
      $region67: #{tpu_custom_call.1} parent=5 // pred_region
        %s995 = ssub.s32 %s19, 2
        // Predicated region
        $region69: #{tpu_custom_call.1} parent=67 // pred_check
          %p996 = pneg %p172
        $region70: #{tpu_custom_call.1} parent=67 // pred_check_branch
          %998 = sbr.rel (%p996) target = $region72
        $region71: #{tpu_custom_call.1} parent=67 // pred_region
          %s999 = sand.u32 %s157, 1
          %s1000 = scalar_lea.sflag [#allocation5], %s999
          %s1001 = sand.u32 %s157, 1
          %s1002 = smul.addr %s1001, 16
          %s1003 = scalar_lea.vmem [#allocation12], %s1002
          %1004 = dma.done %s1000, 256
        $region72: #{tpu_custom_call.1} parent=67 // pred_fallthru
          _
      $region68: #{tpu_custom_call.1} parent=5 // pred_fallthru
        _
    $region6: #{tpu_custom_call.1} parent=1 // loop_footer
      %s23 = sadd.s32 1, %s19
    $region7: #{tpu_custom_call.1} parent=1 // loop_footer_branch
      %18 = sbr.rel target = $region3
    $region8: #{tpu_custom_call.1} parent=1 // loop_exit
      _
    %1005 = vsyncpa [#allocation4], 1
    %s1006 = scalar_lea.sflag [#allocation4], 1
    %1007 = vsyncpa %s1006, 1
    %1008 = vsyncpa [#allocation7], 1
    %1009 = vsyncpa [#allocation10], 1
    %1010 = vsyncpa [#allocation5], 1
    %s1011 = scalar_lea.sflag [#allocation5], 1
    %1012 = vsyncpa %s1011, 1

</llo_original>
